<compile_context>
chip_gen: v7x
topology: tpu7x:2x2x1
jax: 0.10.0
libtpu: 0.0.40
codegen_flags: <defaults>
</compile_context>

<pallas_src>
import functools

import jax
import jax.numpy as jnp
from jax import lax
from jax.experimental import pallas as pl
from jax.experimental.pallas import tpu as pltpu


# ----------------------------- Pallas kernel ---------------------------------

def _pow2_f32(e_int):
    # Exact 2**e for int32 arrays with (e + 127) in [1, 254], built by bit manipulation.
    return pltpu.bitcast(jnp.left_shift(e_int + 127, 23).astype(jnp.int32), jnp.float32)


def _quant_kernel(emin_ref, thresh_ref, sat_ref, x_ref, o_ref, *, man):
    # SMEM scalars (scale already folded into these in the wrapper):
    e_min = emin_ref[0]        # int32: effective min exponent in the *unscaled* domain
    thresh = thresh_ref[0]     # f32  : overflow threshold in the unscaled domain
    sat_bits = sat_ref[0]      # int32: bit pattern of the positive saturation value (+max or +inf)

    x = x_ref[...].astype(jnp.float32)

    bits = pltpu.bitcast(x, jnp.int32)
    sign_bits = jnp.bitwise_and(bits, jnp.int32(-2147483648))                  # sign bit only
    e_raw = jnp.right_shift(jnp.bitwise_and(bits, jnp.int32(0x7FFFFFFF)), 23) - 127
    e = jnp.maximum(e_raw, e_min)

    # Quantize mantissa to `man` bits at exponent e, round-half-to-even.
    q = jnp.round(x * _pow2_f32(man - e)) * _pow2_f32(e - man)

    # Overflow: saturate to +/-max (or +/-inf) via sign-bit OR (no compare+mul sign path).
    over_val = pltpu.bitcast(jnp.bitwise_or(sign_bits, sat_bits), jnp.float32)
    q = jnp.where(jnp.abs(q) > thresh, over_val, q)

    o_ref[...] = q.astype(o_ref.dtype)


# ------------------------------- wrapper --------------------------------------

def _round_up(v, m):
    return (v + m - 1) // m * m


def quantize_custom(x, exp_bias_pow, allow_inf, *, man=2, exp=5,
                    lane=1024, max_block_rows=512):
    """Fake-quantize tensor x to an (exp, man) float format with a power-of-two exponent bias."""
    orig_shape = x.shape
    orig_dtype = x.dtype
    total = int(x.size)

    # ---- flatten to a lane-dense (rows, lane) slab; pad the tail if needed ----
    rows = -(-total // lane)
    grid_n = -(-rows // max_block_rows)
    row_mult = max(8, 32 // jnp.dtype(orig_dtype).itemsize)      # (8/16/32, 128) min tiles
    block_rows = min(rows, _round_up(-(-rows // grid_n), row_mult))
    rows_padded = block_rows * grid_n
    pad = rows_padded * lane - total

    xf = x.reshape(-1)
    if pad:
        xf = jnp.pad(xf, (0, pad))
    x2 = xf.reshape(rows_padded, lane)

    # ---- fold the power-of-two exponent-bias scale into the exponent bounds (scalars) ----
    s = jnp.asarray(exp_bias_pow, jnp.float32)
    b = jnp.right_shift(lax.bitcast_convert_type(s, jnp.int32), 23) - 127     # log2(s), exact
    bias = 2 ** (exp - 1) - 1
    e_min = 1 - bias
    e_max = 2 ** exp - 1 - bias
    max_val = jnp.float32((2.0 - 2.0 ** (-man)) * (2.0 ** e_max))

    # clamp keeps the in-kernel 2**k bit trick within the normal-f32 exponent range
    e_min_eff = jnp.maximum(jnp.int32(e_min) - b, jnp.int32(man - 126)).reshape(1)
    thresh = (max_val / s).reshape(1)                                         # exact: s = 2**b
    sat_val = jnp.float32(jnp.inf) if allow_inf else thresh[0]
    sat_bits = lax.bitcast_convert_type(sat_val, jnp.int32).reshape(1)

    kernel = functools.partial(_quant_kernel, man=man)
    out = pl.pallas_call(
        kernel,
        out_shape=jax.ShapeDtypeStruct((rows_padded, lane), orig_dtype),
        grid_spec=pltpu.PrefetchScalarGridSpec(
            num_scalar_prefetch=0,
            grid=(grid_n,),
            in_specs=[
                pl.BlockSpec(memory_space=pltpu.MemorySpace.SMEM),   # e_min_eff
                pl.BlockSpec(memory_space=pltpu.MemorySpace.SMEM),   # thresh
                pl.BlockSpec(memory_space=pltpu.MemorySpace.SMEM),   # sat_bits
                pl.BlockSpec((block_rows, lane), lambda i: (i, 0)),  # x tile
            ],
            out_specs=pl.BlockSpec((block_rows, lane), lambda i: (i, 0)),
        ),
        compiler_params=pltpu.CompilerParams(
            dimension_semantics=("parallel",),
            vmem_limit_bytes=32 * 1024 * 1024,
        ),
    )(e_min_eff, thresh, sat_bits, x2)

    out = out.reshape(-1)
    if pad:
        out = out[:total]
    return out.reshape(orig_shape)


# -------------------------- module-like wrapper --------------------------------

class FloatingPoint:
    """Deterministic stand-in for the qtorch number format passed as `fwd_num`."""
    def __init__(self, exp, man):
        self.exp = exp
        self.man = man


class QuantizerCustom:
    def __init__(self, fwd_num):
        self.fwd_num = fwd_num

    def __call__(self, x, exp_bias_pow, allow_inf):
        return quantize_custom(x, exp_bias_pow, allow_inf,
                               man=self.fwd_num.man, exp=self.fwd_num.exp)


# ----------------------------- pure-JAX reference -----------------------------

def _quant_ref(x, exp_bias_pow, allow_inf, man, exp):
    s = jnp.float32(exp_bias_pow)
    xs = x.astype(jnp.float32) * s
    bias = 2 ** (exp - 1) - 1
    e_min = 1 - bias
    e_max = 2 ** exp - 1 - bias
    max_val = jnp.float32((2.0 - 2.0 ** (-man)) * (2.0 ** e_max))

    bits = lax.bitcast_convert_type(jnp.abs(xs), jnp.int32)
    e = jnp.maximum((bits >> 23) - 127, e_min)
    pow2 = lambda k: lax.bitcast_convert_type(((k + 127) << 23).astype(jnp.int32), jnp.float32)
    q = jnp.round(xs * pow2(man - e)) * pow2(e - man)
    sign = jnp.where(xs < 0, -1.0, 1.0).astype(jnp.float32)
    over = jnp.abs(q) > max_val
    q = jnp.where(over, sign * (jnp.inf if allow_inf else max_val), q)
    return (q / s).astype(x.dtype)


# ----------------------------------- main --------------------------------------

if __name__ == "__main__":
    key = jax.random.PRNGKey(0)
    x = jax.random.normal(key, (2, 4, 16, 16), dtype=jnp.float32) * 8.0   # NCHW, like PyTorch

    fwd_num = FloatingPoint(exp=5, man=2)          # deterministic "fwd_num" format (E5M2-like)
    quantizer = QuantizerCustom(fwd_num)

    exp_bias_pow = jnp.float32(2.0)                # custom exponent-bias scale (power of two)

    y_sat = quantizer(x, exp_bias_pow, allow_inf=False)
    y_inf = quantizer(x, exp_bias_pow, allow_inf=True)
    jax.block_until_ready((y_sat, y_inf))

    ref_sat = _quant_ref(x, exp_bias_pow, False, fwd_num.man, fwd_num.exp)
    ref_inf = _quant_ref(x, exp_bias_pow, True, fwd_num.man, fwd_num.exp)
    assert jnp.allclose(y_sat, ref_sat), "saturating quantization mismatch"
    assert jnp.allclose(y_inf, ref_inf, equal_nan=True), "allow_inf quantization mismatch"

    # non-lane-aligned spatial shape (7x7) exercises the padded lane-dense slab path
    x2 = jax.random.normal(jax.random.PRNGKey(1), (2, 3, 7, 7), dtype=jnp.float32) * 64.0
    y2 = quantizer(x2, exp_bias_pow, allow_inf=False)
    jax.block_until_ready(y2)
    ref2 = _quant_ref(x2, exp_bias_pow, False, fwd_num.man, fwd_num.exp)
    assert jnp.allclose(y2, ref2), "padded-path quantization mismatch"

    print("KERNEL_OK")
</pallas_src>

<mosaic_0001>
module attributes {stable_mosaic.version = 11 : i64} {
  func.func @_quant_kernel(%arg0: i32, %arg1: memref<1xi32, #tpu.memory_space<smem>>, %arg2: memref<1xf32, #tpu.memory_space<smem>>, %arg3: memref<1xi32, #tpu.memory_space<smem>>, %arg4: memref<2x1024xf32, #tpu.memory_space<vmem>>, %arg5: memref<2x1024xf32, #tpu.memory_space<vmem>>) attributes {dimension_semantics = [#tpu.dimension_semantics<parallel>], iteration_bounds = array<i64: 1>, scalar_prefetch = 0 : i64, scratch_operands = 0 : i64, tpu.core_type = #tpu.core_type<tc>, window_params = [{transform_indices = @transform_0, window_bounds = array<i64: 1>}, {transform_indices = @transform_1, window_bounds = array<i64: 1>}, {transform_indices = @transform_2, window_bounds = array<i64: 1>}, {transform_indices = @transform_3, window_bounds = array<i64: 2, 1024>}, {transform_indices = @transform_4, window_bounds = array<i64: 2, 1024>}]} {
    %c0 = arith.constant 0 : index
    %0 = memref.load %arg1[%c0] : memref<1xi32, #tpu.memory_space<smem>>
    %c0_0 = arith.constant 0 : index
    %1 = memref.load %arg2[%c0_0] : memref<1xf32, #tpu.memory_space<smem>>
    %c0_1 = arith.constant 0 : index
    %2 = memref.load %arg3[%c0_1] : memref<1xi32, #tpu.memory_space<smem>>
    %c0_2 = arith.constant 0 : index
    %c0_3 = arith.constant 0 : index
    %3 = vector.load %arg4[%c0_2, %c0_3] : memref<2x1024xf32, #tpu.memory_space<vmem>>, vector<2x1024xf32>
    %4 = tpu.bitcast %3 : vector<2x1024xf32> -> vector<2x1024xi32>
    %c-2147483648_i32 = arith.constant -2147483648 : i32
    %5 = vector.broadcast %c-2147483648_i32 : i32 to vector<2x1024xi32>
    %6 = arith.andi %4, %5 : vector<2x1024xi32>
    %c2147483647_i32 = arith.constant 2147483647 : i32
    %7 = vector.broadcast %c2147483647_i32 : i32 to vector<2x1024xi32>
    %8 = arith.andi %4, %7 : vector<2x1024xi32>
    %c23_i32 = arith.constant 23 : i32
    %9 = vector.broadcast %c23_i32 : i32 to vector<2x1024xi32>
    %10 = arith.shrsi %8, %9 : vector<2x1024xi32>
    %c127_i32 = arith.constant 127 : i32
    %11 = vector.broadcast %c127_i32 : i32 to vector<2x1024xi32>
    %12 = arith.subi %10, %11 : vector<2x1024xi32>
    %13 = vector.broadcast %0 : i32 to vector<2x1024xi32>
    %14 = arith.maxsi %12, %13 : vector<2x1024xi32>
    %c2_i32 = arith.constant 2 : i32
    %15 = vector.broadcast %c2_i32 : i32 to vector<2x1024xi32>
    %16 = arith.subi %15, %14 : vector<2x1024xi32>
    %c127_i32_4 = arith.constant 127 : i32
    %17 = vector.broadcast %c127_i32_4 : i32 to vector<2x1024xi32>
    %18 = arith.addi %16, %17 : vector<2x1024xi32>
    %c23_i32_5 = arith.constant 23 : i32
    %19 = vector.broadcast %c23_i32_5 : i32 to vector<2x1024xi32>
    %20 = arith.shli %18, %19 : vector<2x1024xi32>
    %21 = tpu.bitcast %20 : vector<2x1024xi32> -> vector<2x1024xf32>
    %22 = arith.mulf %3, %21 : vector<2x1024xf32>
    %23 = math.roundeven %22 : vector<2x1024xf32>
    %c2_i32_6 = arith.constant 2 : i32
    %24 = vector.broadcast %c2_i32_6 : i32 to vector<2x1024xi32>
    %25 = arith.subi %14, %24 : vector<2x1024xi32>
    %c127_i32_7 = arith.constant 127 : i32
    %26 = vector.broadcast %c127_i32_7 : i32 to vector<2x1024xi32>
    %27 = arith.addi %25, %26 : vector<2x1024xi32>
    %c23_i32_8 = arith.constant 23 : i32
    %28 = vector.broadcast %c23_i32_8 : i32 to vector<2x1024xi32>
    %29 = arith.shli %27, %28 : vector<2x1024xi32>
    %30 = tpu.bitcast %29 : vector<2x1024xi32> -> vector<2x1024xf32>
    %31 = arith.mulf %23, %30 : vector<2x1024xf32>
    %32 = vector.broadcast %2 : i32 to vector<2x1024xi32>
    %33 = arith.ori %6, %32 : vector<2x1024xi32>
    %34 = tpu.bitcast %33 : vector<2x1024xi32> -> vector<2x1024xf32>
    %35 = math.absf %31 : vector<2x1024xf32>
    %36 = vector.broadcast %1 : f32 to vector<2x1024xf32>
    %37 = arith.cmpf ogt, %35, %36 : vector<2x1024xf32>
    %38 = arith.select %37, %34, %31 : vector<2x1024xi1>, vector<2x1024xf32>
    %c0_9 = arith.constant 0 : index
    %c0_10 = arith.constant 0 : index
    %39 = vector.load %arg5[%c0_9, %c0_10] : memref<2x1024xf32, #tpu.memory_space<vmem>>, vector<2x1024xf32>
    tpu.vector_store %arg5[%c0_9, %c0_10], %38 {strides = array<i32>} : memref<2x1024xf32, #tpu.memory_space<vmem>>, vector<2x1024xf32>,
    return
  }
  func.func @transform_0(%arg0: i32) -> i32 {
    %c0_i32 = arith.constant 0 : i32
    %c0_i32_0 = arith.constant 0 : i32
    return %c0_i32 : i32
  }
  func.func @transform_1(%arg0: i32) -> i32 {
    %c0_i32 = arith.constant 0 : i32
    %c0_i32_0 = arith.constant 0 : i32
    return %c0_i32 : i32
  }
  func.func @transform_2(%arg0: i32) -> i32 {
    %c0_i32 = arith.constant 0 : i32
    %c0_i32_0 = arith.constant 0 : i32
    return %c0_i32 : i32
  }
  func.func @transform_3(%arg0: i32) -> (i32, i32) {
    %c0_i32 = arith.constant 0 : i32
    %c0_i32_0 = arith.constant 0 : i32
    return %arg0, %c0_i32 : i32, i32
  }
  func.func @transform_4(%arg0: i32) -> (i32, i32) {
    %c0_i32 = arith.constant 0 : i32
    %c0_i32_0 = arith.constant 0 : i32
    return %arg0, %c0_i32 : i32, i32
  }
}

</mosaic_0001>

<llo_original>
// kernel: tpu_custom_call.1
$region0: #{tpu_custom_call.1}
  #allocation0 [shape = 'u32[]', space=smem, size = 0x4, offset = 0x4, fixed_abs, tag = 'smem constant byte address 0x4 - core index']
  #allocation1 [shape = 'u32[144,128]{1,0:T(1,128)}', space=vmem, size = 0x12000, scoped, tag = 'internal scratch']
  #allocation2 [shape = 's32[1]{0:T(128)S(6)}', space=smem, size = 0x200, scoped, tag = 'scoped memory for tpu_custom_call.1']
  #allocation3 [shape = 'f32[1]{0:T(128)S(6)}', space=smem, size = 0x200, scoped, tag = 'scoped memory for tpu_custom_call.1']
  #allocation4 [shape = 's32[1]{0:T(128)S(6)}', space=smem, size = 0x200, scoped, tag = 'scoped memory for tpu_custom_call.1']
  %s0 = inlined_call_operand.<no memory space> [shape: s32[1], index: 0, kind: input, shape index: {}]
  %s1 = inlined_call_operand.<no memory space> [shape: f32[1], index: 1, kind: input, shape index: {}]
  %s2 = inlined_call_operand.<no memory space> [shape: s32[1], index: 2, kind: input, shape index: {}]
  %s3 = inlined_call_operand.hbm [shape: f32[2,1024], index: 3, kind: input, shape index: {}]
  %s4 = inlined_call_operand.hbm [shape: f32[2,1024], index: 4, kind: output, shape index: {}]
  %s5 = sld [smem:[#allocation0]]
  $region30: #{tpu_custom_call.1} parent=0
    _
  %s7 = ssub.s32 1, %s5
  %s8 = scalar_select 0, %s7, %s5
  %9 = sst [smem:[#allocation2]] %s0
  %10 = sst [smem:[#allocation3]] %s1
  %11 = sst [smem:[#allocation4]] %s2
  $region1: #{tpu_custom_call.1} parent=0
    #allocation5 [shape = 'u8[8192]{0}', space=vmem, size = 0x2000, scoped, tag = 'input window, operand 3, single buffered']
    #allocation6 [shape = 's32[1]{0}', space=sflag, size = 0x4, scoped, tag = 'scoped memory for tpu_custom_call.1']
    #allocation7 [shape = 's32[1]{0}', space=sflag, size = 0x4, scoped, tag = 'scoped memory for tpu_custom_call.1']
    #allocation8 [shape = 'u8[8192]{0}', space=vmem, size = 0x2000, scoped, tag = 'output window, operand 0, single buffered']
    %12 = vsyncpa [#allocation6], 0
    %13 = vsyncpa [#allocation7], 0
    // Predicated region
    $region2: #{tpu_custom_call.1} parent=1 // pred_check
      _
    $region3: #{tpu_custom_call.1} parent=1 // pred_check_branch
      %15 = sbr.rel (0) target = $region5
    $region4: #{tpu_custom_call.1} parent=1 // pred_region
      _
    $region5: #{tpu_custom_call.1} parent=1 // pred_fallthru
      _
    // Predicated region
    $region6: #{tpu_custom_call.1} parent=1 // pred_check
      _
    $region7: #{tpu_custom_call.1} parent=1 // pred_check_branch
      %17 = sbr.rel (0) target = $region9
    $region8: #{tpu_custom_call.1} parent=1 // pred_region
      _
    $region9: #{tpu_custom_call.1} parent=1 // pred_fallthru
      _
    // Predicated region
    $region10: #{tpu_custom_call.1} parent=1 // pred_check
      _
    $region11: #{tpu_custom_call.1} parent=1 // pred_check_branch
      %19 = sbr.rel (0) target = $region13
    $region12: #{tpu_custom_call.1} parent=1 // pred_region
      _
    $region13: #{tpu_custom_call.1} parent=1 // pred_fallthru
      _
    // Predicated region
    $region14: #{tpu_custom_call.1} parent=1 // pred_check
      _
    $region15: #{tpu_custom_call.1} parent=1 // pred_check_branch
      %21 = sbr.rel (0) target = $region17
    $region16: #{tpu_custom_call.1} parent=1 // pred_region
      %s23 = ssub.s32 256, 256
      %24 = vsyncadd [#allocation6], %s23
      %s26 = sshll.u32 [#allocation5], 4
      %s27 = int_to_ptr.vmem [resolvable:$true] %s26
      %29 = dma.hbm_to_vmem [thread:$0]  %s3, 256, %s27, [#allocation6]
    $region17: #{tpu_custom_call.1} parent=1 // pred_fallthru
      _
    // Predicated region
    $region18: #{tpu_custom_call.1} parent=1 // pred_check
      _
    $region19: #{tpu_custom_call.1} parent=1 // pred_check_branch
      %31 = sbr.rel (0) target = $region21
    $region20: #{tpu_custom_call.1} parent=1 // pred_region
      %32 = dma.done [#allocation6], 256
    $region21: #{tpu_custom_call.1} parent=1 // pred_fallthru
      _
    %s33 = sld [smem:[#allocation2]]
    %s34 = sld [smem:[#allocation3]]
    %s35 = sld [smem:[#allocation4]]
    %v36 = vld [vmem:[#allocation5] sm:$0xff]
    %v37 = vld [vmem:[#allocation5 + $0x8] sm:$0xff]
    %v40 = vcombine.high %v36, %v36
    %v42 = vunpack.c.l.s4 1983009808
    %v43 = vunpack.c.0.s8 %v42
    %v44 = vlaneseq
    %v45 = vshrl.u32 %v44, 7
    %v46 = vsub.s32 %v43, %v45
    %v47 = vrot.slane %v36, %v46
    %v49 = vunpack.c.l.s4 1983009808
    %v50 = vunpack.c.0.s8 %v49
    %v51 = vlaneseq
    %v52 = vshrl.u32 %v51, 7
    %v53 = vsub.s32 %v50, %v52
    %v54 = vrot.slane %v40, %v53
    %v55 = vcombine.high %v47, %v47
    %v56 = vcombine.high %v54, %v54
    %v57 = vcombine.high %v37, %v37
    %v59 = vunpack.c.l.s4 1983009808
    %v60 = vunpack.c.0.s8 %v59
    %v61 = vlaneseq
    %v62 = vshrl.u32 %v61, 7
    %v63 = vsub.s32 %v60, %v62
    %v64 = vrot.slane %v37, %v63
    %v66 = vunpack.c.l.s4 1983009808
    %v67 = vunpack.c.0.s8 %v66
    %v68 = vlaneseq
    %v69 = vshrl.u32 %v68, 7
    %v70 = vsub.s32 %v67, %v69
    %v71 = vrot.slane %v57, %v70
    %v72 = vcombine.high %v64, %v64
    %v73 = vcombine.high %v71, %v71
    %v74 = vand.u32 %v47, 2147483648
    %v75 = vand.u32 %v55, 2147483648
    %v76 = vand.u32 %v54, 2147483648
    %v77 = vand.u32 %v56, 2147483648
    %v78 = vand.u32 %v64, 2147483648
    %v79 = vand.u32 %v72, 2147483648
    %v80 = vand.u32 %v71, 2147483648
    %v81 = vand.u32 %v73, 2147483648
    %v82 = vand.u32 %v47, 2147483647
    %v83 = vand.u32 %v55, 2147483647
    %v84 = vand.u32 %v54, 2147483647
    %v85 = vand.u32 %v56, 2147483647
    %v86 = vand.u32 %v64, 2147483647
    %v87 = vand.u32 %v72, 2147483647
    %v88 = vand.u32 %v71, 2147483647
    %v89 = vand.u32 %v73, 2147483647
    %v90 = vshra.s32 %v82, 23
    %v91 = vshra.s32 %v83, 23
    %v92 = vshra.s32 %v84, 23
    %v93 = vshra.s32 %v85, 23
    %v94 = vshra.s32 %v86, 23
    %v95 = vshra.s32 %v87, 23
    %v96 = vshra.s32 %v88, 23
    %v97 = vshra.s32 %v89, 23
    %v98 = vsub.s32 %v90, 127
    %v99 = vsub.s32 %v91, 127
    %v100 = vsub.s32 %v92, 127
    %v101 = vsub.s32 %v93, 127
    %v102 = vsub.s32 %v94, 127
    %v103 = vsub.s32 %v95, 127
    %v104 = vsub.s32 %v96, 127
    %v105 = vsub.s32 %v97, 127
    %v106 = vstv %s33
    %vm107 = vcmp.gt.s32.totalorder %v98, %v106
    %v108 = vsel %vm107, %v98, %v106
    %vm109 = vcmp.gt.s32.totalorder %v99, %v106
    %v110 = vsel %vm109, %v99, %v106
    %vm111 = vcmp.gt.s32.totalorder %v100, %v106
    %v112 = vsel %vm111, %v100, %v106
    %vm113 = vcmp.gt.s32.totalorder %v101, %v106
    %v114 = vsel %vm113, %v101, %v106
    %vm115 = vcmp.gt.s32.totalorder %v102, %v106
    %v116 = vsel %vm115, %v102, %v106
    %vm117 = vcmp.gt.s32.totalorder %v103, %v106
    %v118 = vsel %vm117, %v103, %v106
    %vm119 = vcmp.gt.s32.totalorder %v104, %v106
    %v120 = vsel %vm119, %v104, %v106
    %vm121 = vcmp.gt.s32.totalorder %v105, %v106
    %v122 = vsel %vm121, %v105, %v106
    %v123 = vsub.s32 2, %v108
    %v124 = vsub.s32 2, %v110
    %v125 = vsub.s32 2, %v112
    %v126 = vsub.s32 2, %v114
    %v127 = vsub.s32 2, %v116
    %v128 = vsub.s32 2, %v118
    %v129 = vsub.s32 2, %v120
    %v130 = vsub.s32 2, %v122
    %v131 = vadd.s32 %v123, 127
    %v132 = vadd.s32 %v124, 127
    %v133 = vadd.s32 %v125, 127
    %v134 = vadd.s32 %v126, 127
    %v135 = vadd.s32 %v127, 127
    %v136 = vadd.s32 %v128, 127
    %v137 = vadd.s32 %v129, 127
    %v138 = vadd.s32 %v130, 127
    %v139 = vshll.u32 %v131, 23
    %v140 = vshll.u32 %v132, 23
    %v141 = vshll.u32 %v133, 23
    %v142 = vshll.u32 %v134, 23
    %v143 = vshll.u32 %v135, 23
    %v144 = vshll.u32 %v136, 23
    %v145 = vshll.u32 %v137, 23
    %v146 = vshll.u32 %v138, 23
    %v147 = vcombine.low %v139, %v140
    %v148 = vcombine.low %v141, %v142
    %v150 = vunpack.c.l.s4 1983009808
    %v151 = vunpack.c.0.s8 %v150
    %v152 = vlaneseq
    %v153 = vshrl.u32 %v152, 7
    %v154 = vsub.s32 %v151, %v153
    %v155 = vrot.slane %v147, %v154
    %v157 = vunpack.c.l.s4 1983009808
    %v158 = vunpack.c.0.s8 %v157
    %v159 = vlaneseq
    %v160 = vshrl.u32 %v159, 7
    %v161 = vsub.s32 %v158, %v160
    %v162 = vrot.slane %v148, %v161
    %v163 = vcombine.low %v155, %v162
    %v164 = vcombine.low %v143, %v144
    %v165 = vcombine.low %v145, %v146
    %v167 = vunpack.c.l.s4 1983009808
    %v168 = vunpack.c.0.s8 %v167
    %v169 = vlaneseq
    %v170 = vshrl.u32 %v169, 7
    %v171 = vsub.s32 %v168, %v170
    %v172 = vrot.slane %v164, %v171
    %v174 = vunpack.c.l.s4 1983009808
    %v175 = vunpack.c.0.s8 %v174
    %v176 = vlaneseq
    %v177 = vshrl.u32 %v176, 7
    %v178 = vsub.s32 %v175, %v177
    %v179 = vrot.slane %v165, %v178
    %v180 = vcombine.low %v172, %v179
    %v183 = vmul.f32 %v36, %v163
    %v184 = vmul.f32 %v37, %v180
    %v185 = vround.ne.pseudo %v183
    %v186 = vround.ne.pseudo %v184
    %v187 = vsub.s32 %v108, 2
    %v188 = vsub.s32 %v110, 2
    %v189 = vsub.s32 %v112, 2
    %v190 = vsub.s32 %v114, 2
    %v191 = vsub.s32 %v116, 2
    %v192 = vsub.s32 %v118, 2
    %v193 = vsub.s32 %v120, 2
    %v194 = vsub.s32 %v122, 2
    %v195 = vadd.s32 %v187, 127
    %v196 = vadd.s32 %v188, 127
    %v197 = vadd.s32 %v189, 127
    %v198 = vadd.s32 %v190, 127
    %v199 = vadd.s32 %v191, 127
    %v200 = vadd.s32 %v192, 127
    %v201 = vadd.s32 %v193, 127
    %v202 = vadd.s32 %v194, 127
    %v203 = vshll.u32 %v195, 23
    %v204 = vshll.u32 %v196, 23
    %v205 = vshll.u32 %v197, 23
    %v206 = vshll.u32 %v198, 23
    %v207 = vshll.u32 %v199, 23
    %v208 = vshll.u32 %v200, 23
    %v209 = vshll.u32 %v201, 23
    %v210 = vshll.u32 %v202, 23
    %v211 = vcombine.low %v203, %v204
    %v212 = vcombine.low %v205, %v206
    %v214 = vunpack.c.l.s4 1983009808
    %v215 = vunpack.c.0.s8 %v214
    %v216 = vlaneseq
    %v217 = vshrl.u32 %v216, 7
    %v218 = vsub.s32 %v215, %v217
    %v219 = vrot.slane %v211, %v218
    %v221 = vunpack.c.l.s4 1983009808
    %v222 = vunpack.c.0.s8 %v221
    %v223 = vlaneseq
    %v224 = vshrl.u32 %v223, 7
    %v225 = vsub.s32 %v222, %v224
    %v226 = vrot.slane %v212, %v225
    %v227 = vcombine.low %v219, %v226
    %v228 = vcombine.low %v207, %v208
    %v229 = vcombine.low %v209, %v210
    %v231 = vunpack.c.l.s4 1983009808
    %v232 = vunpack.c.0.s8 %v231
    %v233 = vlaneseq
    %v234 = vshrl.u32 %v233, 7
    %v235 = vsub.s32 %v232, %v234
    %v236 = vrot.slane %v228, %v235
    %v238 = vunpack.c.l.s4 1983009808
    %v239 = vunpack.c.0.s8 %v238
    %v240 = vlaneseq
    %v241 = vshrl.u32 %v240, 7
    %v242 = vsub.s32 %v239, %v241
    %v243 = vrot.slane %v229, %v242
    %v244 = vcombine.low %v236, %v243
    %v247 = vmul.f32 %v185, %v227
    %v248 = vmul.f32 %v186, %v244
    %v249 = vstv %s35
    %v250 = vor.u32 %v74, %v249
    %v251 = vor.u32 %v75, %v249
    %v252 = vor.u32 %v76, %v249
    %v253 = vor.u32 %v77, %v249
    %v254 = vor.u32 %v78, %v249
    %v255 = vor.u32 %v79, %v249
    %v256 = vor.u32 %v80, %v249
    %v257 = vor.u32 %v81, %v249
    %v258 = vand.u32 2147483647, %v247
    %v259 = vand.u32 2147483647, %v248
    %v260 = vstv %s34
    %vm261 = vcmp.gt.f32.partialorder %v258, %v260
    %vm262 = vcmp.gt.f32.partialorder %v259, %v260
    %v263 = vcombine.low %v250, %v251
    %v264 = vcombine.low %v252, %v253
    %v266 = vunpack.c.l.s4 1983009808
    %v267 = vunpack.c.0.s8 %v266
    %v268 = vlaneseq
    %v269 = vshrl.u32 %v268, 7
    %v270 = vsub.s32 %v267, %v269
    %v271 = vrot.slane %v263, %v270
    %v273 = vunpack.c.l.s4 1983009808
    %v274 = vunpack.c.0.s8 %v273
    %v275 = vlaneseq
    %v276 = vshrl.u32 %v275, 7
    %v277 = vsub.s32 %v274, %v276
    %v278 = vrot.slane %v264, %v277
    %v279 = vcombine.low %v271, %v278
    %v280 = vcombine.low %v254, %v255
    %v281 = vcombine.low %v256, %v257
    %v283 = vunpack.c.l.s4 1983009808
    %v284 = vunpack.c.0.s8 %v283
    %v285 = vlaneseq
    %v286 = vshrl.u32 %v285, 7
    %v287 = vsub.s32 %v284, %v286
    %v288 = vrot.slane %v280, %v287
    %v290 = vunpack.c.l.s4 1983009808
    %v291 = vunpack.c.0.s8 %v290
    %v292 = vlaneseq
    %v293 = vshrl.u32 %v292, 7
    %v294 = vsub.s32 %v291, %v293
    %v295 = vrot.slane %v281, %v294
    %v296 = vcombine.low %v288, %v295
    %v299 = vsel %vm261, %v279, %v247
    %v300 = vsel %vm262, %v296, %v248
    %301 = vst [vmem:[#allocation8] sm:$0xff] %v299
    %302 = vst [vmem:[#allocation8 + $0x8] sm:$0xff] %v300
    // Predicated region
    $region22: #{tpu_custom_call.1} parent=1 // pred_check
      _
    $region23: #{tpu_custom_call.1} parent=1 // pred_check_branch
      %304 = sbr.rel (0) target = $region25
    $region24: #{tpu_custom_call.1} parent=1 // pred_region
      %s306 = ssub.s32 256, 256
      %307 = vsyncadd [#allocation7], %s306
      %s309 = sshll.u32 [#allocation8], 4
      %s310 = int_to_ptr.vmem [resolvable:$true] %s309
      %312 = dma.vmem_to_hbm [thread:$0]  %s310, 256, %s4, [#allocation7]
    $region25: #{tpu_custom_call.1} parent=1 // pred_fallthru
      _
    // Predicated region
    $region26: #{tpu_custom_call.1} parent=1 // pred_check
      _
    $region27: #{tpu_custom_call.1} parent=1 // pred_check_branch
      %314 = sbr.rel (0) target = $region29
    $region28: #{tpu_custom_call.1} parent=1 // pred_region
      %315 = dma.done [#allocation7], 256
    $region29: #{tpu_custom_call.1} parent=1 // pred_fallthru
      _
    %316 = vsyncpa [#allocation6], 1
    %317 = vsyncpa [#allocation7], 1

</llo_original>
